<compile_context>
chip_gen: v7x
topology: tpu7x:2x2x1
jax: 0.10.0
libtpu: 0.0.40
codegen_flags: <defaults>
</compile_context>

<pallas_src>
import math
from functools import partial

import jax
import jax.numpy as jnp
from jax.experimental import pallas as pl
from jax.experimental.pallas import tpu as pltpu


IN_DIM = 8
H1, H2, H3 = 12, 64, 64
OUT_DIM = 5
LAYER_DIMS = (IN_DIM, H1, H2, H3, OUT_DIM)


def _sensor_net_kernel(mxu_bf16,
                       x_ref,
                       w1_ref, b1_ref,
                       w2_ref, b2_ref,
                       w3_ref, b3_ref,
                       w4_ref, b4_ref,
                       o_ref):
    # Feature-major: activations are [features, TB] (batch on the lane axis).
    # Weights are PyTorch-layout [out, in]; biases are [out, 1] (broadcast on lanes).
    # Matmuls hit the MXU (bf16 operands, f32 accumulation); bias/ReLU are f32 VPU ops.
    if mxu_bf16:
        dot_kwargs = dict(preferred_element_type=jnp.float32)
        cast = lambda a: a.astype(jnp.bfloat16)
    else:
        dot_kwargs = dict(preferred_element_type=jnp.float32,
                          precision=jax.lax.Precision.HIGHEST)
        cast = lambda a: a

    h = cast(x_ref[...])                                            # [8, TB]
    h = jnp.dot(w1_ref[...], h, **dot_kwargs) + b1_ref[...]        # [12, TB] f32
    h = cast(jnp.maximum(h, 0.0))
    h = jnp.dot(w2_ref[...], h, **dot_kwargs) + b2_ref[...]        # [64, TB] f32
    h = cast(jnp.maximum(h, 0.0))
    h = jnp.dot(w3_ref[...], h, **dot_kwargs) + b3_ref[...]        # [64, TB] f32
    h = cast(jnp.maximum(h, 0.0))
    h = jnp.dot(w4_ref[...], h, **dot_kwargs) + b4_ref[...]        # [5, TB] f32
    o_ref[...] = h.astype(o_ref.dtype)


def _round_up(n, m):
    return ((n + m - 1) // m) * m


def _choose_batch_tile(B, batch_tile):
    # Lane-axis (batch) tile must be a multiple of 128, or equal to the full batch.
    if B <= 128:
        return B                                   # single full block
    # Cap so the grid has >= 2 steps: keeps both v7x TensorCores busy for moderate B.
    cap = _round_up((B + 1) // 2, 128)
    tb = min(max(_round_up(batch_tile, 128), 128), cap)
    return tb


def _xla_forward(x, params, *, mxu_bf16=True):
    # Tiny-batch fallback: same math as the kernel (bf16 dot operands, f32 accum).
    cast = (lambda a: a.astype(jnp.bfloat16)) if mxu_bf16 else (lambda a: a)
    h = x
    for i, (w, b) in enumerate(params):
        h = jnp.dot(cast(h), cast(w).T,
                    preferred_element_type=jnp.float32) + b.reshape(1, -1)
        if i < len(params) - 1:
            h = jnp.maximum(h, 0.0)
    return h


def sensor_net_forward(x, params, *, batch_tile=1024, mxu_bf16=True,
                       small_batch_threshold=64):
    """x: [B, IN_DIM] f32. params: ((W1,b1),...,(W4,b4)), W: [out, in], b: [out, 1]."""
    (w1, b1), (w2, b2), (w3, b3), (w4, b4) = params
    B = x.shape[0]

    if B <= small_batch_threshold:
        # pallas_call fixed cost (grid setup, DMA priming, weight fetch) dominates
        # at tiny batches; plain XLA is faster and keeps semantics identical.
        return _xla_forward(x, params, mxu_bf16=mxu_bf16)

    w_dtype = jnp.bfloat16 if mxu_bf16 else jnp.float32
    ws = [w.astype(w_dtype) for w in (w1, w2, w3, w4)]
    bs = [b.astype(jnp.float32) for b in (b1, b2, b3, b4)]

    xT = x.T                                        # [IN_DIM, B]: batch on lanes
    tb = _choose_batch_tile(B, batch_tile)
    grid = (pl.cdiv(B, tb),)

    const = lambda i: (0, 0)
    weight_specs = []
    for w, b in zip(ws, bs):
        weight_specs += [pl.BlockSpec(w.shape, const), pl.BlockSpec(b.shape, const)]

    flops = 2 * B * sum(a * b for a, b in zip(LAYER_DIMS[:-1], LAYER_DIMS[1:]))
    param_bytes = sum(int(a.size) * a.dtype.itemsize for a in ws + bs)
    bytes_accessed = int(x.size) * x.dtype.itemsize + B * OUT_DIM * 4 + param_bytes

    outT = pl.pallas_call(
        partial(_sensor_net_kernel, mxu_bf16),
        out_shape=jax.ShapeDtypeStruct((OUT_DIM, B), jnp.float32),
        grid=grid,
        in_specs=[pl.BlockSpec((IN_DIM, tb), lambda i: (0, i))] + weight_specs,
        out_specs=pl.BlockSpec((OUT_DIM, tb), lambda i: (0, i)),
        compiler_params=pltpu.CompilerParams(
            # Rows (lanes) are independent: shard grid steps across TCs (v7x megacore).
            dimension_semantics=("parallel",),
        ),
        cost_estimate=pl.CostEstimate(
            flops=flops, transcendentals=0, bytes_accessed=bytes_accessed),
    )(xT, ws[0], bs[0], ws[1], bs[1], ws[2], bs[2], ws[3], bs[3])

    return outT.T                                   # [B, OUT_DIM]


def init_linear(key, in_features, out_features):
    # PyTorch nn.Linear default init: U(-1/sqrt(in), 1/sqrt(in)) for W and b.
    # Stored in PyTorch layout W: [out, in] (kernel computes W @ x_fm), b: [out, 1].
    kw, kb = jax.random.split(key)
    bound = 1.0 / math.sqrt(in_features)
    w = jax.random.uniform(kw, (out_features, in_features), jnp.float32,
                           minval=-bound, maxval=bound)
    b = jax.random.uniform(kb, (out_features, 1), jnp.float32,
                           minval=-bound, maxval=bound)
    return w, b


def make_params(key):
    keys = jax.random.split(key, 4)
    return (
        init_linear(keys[0], IN_DIM, H1),
        init_linear(keys[1], H1, H2),
        init_linear(keys[2], H2, H3),
        init_linear(keys[3], H3, OUT_DIM),
    )


def reference_forward(x, params):
    # Full-f32 PyTorch-semantics reference: x @ W.T + b, ReLU between layers.
    h = x
    for i, (w, b) in enumerate(params):
        h = h @ w.T + b.reshape(1, -1)
        if i < len(params) - 1:
            h = jnp.maximum(h, 0.0)
    return h


if __name__ == "__main__":
    key = jax.random.PRNGKey(0)
    k_params, k_x1, k_x2 = jax.random.split(key, 3)

    params = make_params(k_params)

    # Moderate batch: 2 grid steps (both v7x TCs get work), lane-dense blocks.
    x1 = jax.random.normal(k_x1, (256, IN_DIM), jnp.float32)
    out1 = jax.block_until_ready(sensor_net_forward(x1, params))
    ref1 = reference_forward(x1, params)
    assert out1.shape == (256, OUT_DIM)
    assert jnp.allclose(out1, ref1, atol=5e-2, rtol=5e-2)

    # Non-divisible batch: exercises the masked tail block (tb=640, grid=2).
    x2 = jax.random.normal(k_x2, (1100, IN_DIM), jnp.float32)
    out2 = jax.block_until_ready(sensor_net_forward(x2, params, batch_tile=1024))
    ref2 = reference_forward(x2, params)
    assert out2.shape == (1100, OUT_DIM)
    assert jnp.allclose(out2, ref2, atol=5e-2, rtol=5e-2)

    # Tiny batch: takes the plain-XLA fast path (pallas fixed cost would dominate).
    x3 = x1[:16]
    out3 = jax.block_until_ready(sensor_net_forward(x3, params))
    ref3 = reference_forward(x3, params)
    assert out3.shape == (16, OUT_DIM)
    assert jnp.allclose(out3, ref3, atol=5e-2, rtol=5e-2)

    print("KERNEL_OK")
</pallas_src>

<mosaic_0001>
module attributes {stable_mosaic.version = 11 : i64} {
  func.func @_sensor_net_kernel(%arg0: i32, %arg1: memref<8x128xf32, #tpu.memory_space<vmem>>, %arg2: memref<12x8xbf16, #tpu.memory_space<vmem>>, %arg3: memref<12x1xf32, #tpu.memory_space<vmem>>, %arg4: memref<64x12xbf16, #tpu.memory_space<vmem>>, %arg5: memref<64x1xf32, #tpu.memory_space<vmem>>, %arg6: memref<64x64xbf16, #tpu.memory_space<vmem>>, %arg7: memref<64x1xf32, #tpu.memory_space<vmem>>, %arg8: memref<5x64xbf16, #tpu.memory_space<vmem>>, %arg9: memref<5x1xf32, #tpu.memory_space<vmem>>, %arg10: memref<5x128xf32, #tpu.memory_space<vmem>>) attributes {dimension_semantics = [#tpu.dimension_semantics<parallel>], iteration_bounds = array<i64: 2>, scalar_prefetch = 0 : i64, scratch_operands = 0 : i64, tpu.core_type = #tpu.core_type<tc>, window_params = [{transform_indices = @transform_0, window_bounds = array<i64: 8, 128>}, {pipeline_mode = #tpu.pipeline_mode<synchronous>, transform_indices = @transform_1, window_bounds = array<i64: 12, 8>}, {pipeline_mode = #tpu.pipeline_mode<synchronous>, transform_indices = @transform_2, window_bounds = array<i64: 12, 1>}, {pipeline_mode = #tpu.pipeline_mode<synchronous>, transform_indices = @transform_3, window_bounds = array<i64: 64, 12>}, {pipeline_mode = #tpu.pipeline_mode<synchronous>, transform_indices = @transform_4, window_bounds = array<i64: 64, 1>}, {pipeline_mode = #tpu.pipeline_mode<synchronous>, transform_indices = @transform_5, window_bounds = array<i64: 64, 64>}, {pipeline_mode = #tpu.pipeline_mode<synchronous>, transform_indices = @transform_6, window_bounds = array<i64: 64, 1>}, {pipeline_mode = #tpu.pipeline_mode<synchronous>, transform_indices = @transform_7, window_bounds = array<i64: 5, 64>}, {pipeline_mode = #tpu.pipeline_mode<synchronous>, transform_indices = @transform_8, window_bounds = array<i64: 5, 1>}, {transform_indices = @transform_9, window_bounds = array<i64: 5, 128>}]} {
    %c0 = arith.constant 0 : index
    %c0_0 = arith.constant 0 : index
    %0 = vector.load %arg1[%c0, %c0_0] : memref<8x128xf32, #tpu.memory_space<vmem>>, vector<8x128xf32>
    %1 = arith.truncf %0 : vector<8x128xf32> to vector<8x128xbf16>
    %c0_1 = arith.constant 0 : index
    %c0_2 = arith.constant 0 : index
    %2 = vector.load %arg2[%c0_1, %c0_2] : memref<12x8xbf16, #tpu.memory_space<vmem>>, vector<12x8xbf16>
    %cst = arith.constant dense<0.000000e+00> : vector<12x128xf32>
    %3 = tpu.matmul %2, %1, %cst {dimension_numbers = #tpu.dot_dimension_numbers<[1], [0], [0], [1], [0, 0, 1, 1], [], []>} : vector<12x8xbf16>, vector<8x128xbf16>, vector<12x128xf32> -> vector<12x128xf32>
    %c0_3 = arith.constant 0 : index
    %c0_4 = arith.constant 0 : index
    %4 = vector.load %arg3[%c0_3, %c0_4] : memref<12x1xf32, #tpu.memory_space<vmem>>, vector<12x1xf32>
    %5 = vector.broadcast %4 : vector<12x1xf32> to vector<12x128xf32>
    %6 = arith.addf %3, %5 : vector<12x128xf32>
    %cst_5 = arith.constant 0.000000e+00 : f32
    %7 = vector.broadcast %cst_5 : f32 to vector<12x128xf32>
    %8 = arith.maximumf %6, %7 : vector<12x128xf32>
    %9 = arith.truncf %8 : vector<12x128xf32> to vector<12x128xbf16>
    %c0_6 = arith.constant 0 : index
    %c0_7 = arith.constant 0 : index
    %10 = vector.load %arg4[%c0_6, %c0_7] : memref<64x12xbf16, #tpu.memory_space<vmem>>, vector<64x12xbf16>
    %cst_8 = arith.constant dense<0.000000e+00> : vector<64x128xf32>
    %11 = tpu.matmul %10, %9, %cst_8 {dimension_numbers = #tpu.dot_dimension_numbers<[1], [0], [0], [1], [0, 0, 1, 1], [], []>} : vector<64x12xbf16>, vector<12x128xbf16>, vector<64x128xf32> -> vector<64x128xf32>
    %c0_9 = arith.constant 0 : index
    %c0_10 = arith.constant 0 : index
    %12 = vector.load %arg5[%c0_9, %c0_10] : memref<64x1xf32, #tpu.memory_space<vmem>>, vector<64x1xf32>
    %13 = vector.broadcast %12 : vector<64x1xf32> to vector<64x128xf32>
    %14 = arith.addf %11, %13 : vector<64x128xf32>
    %cst_11 = arith.constant 0.000000e+00 : f32
    %15 = vector.broadcast %cst_11 : f32 to vector<64x128xf32>
    %16 = arith.maximumf %14, %15 : vector<64x128xf32>
    %17 = arith.truncf %16 : vector<64x128xf32> to vector<64x128xbf16>
    %c0_12 = arith.constant 0 : index
    %c0_13 = arith.constant 0 : index
    %18 = vector.load %arg6[%c0_12, %c0_13] : memref<64x64xbf16, #tpu.memory_space<vmem>>, vector<64x64xbf16>
    %cst_14 = arith.constant dense<0.000000e+00> : vector<64x128xf32>
    %19 = tpu.matmul %18, %17, %cst_14 {dimension_numbers = #tpu.dot_dimension_numbers<[1], [0], [0], [1], [0, 0, 1, 1], [], []>} : vector<64x64xbf16>, vector<64x128xbf16>, vector<64x128xf32> -> vector<64x128xf32>
    %c0_15 = arith.constant 0 : index
    %c0_16 = arith.constant 0 : index
    %20 = vector.load %arg7[%c0_15, %c0_16] : memref<64x1xf32, #tpu.memory_space<vmem>>, vector<64x1xf32>
    %21 = vector.broadcast %20 : vector<64x1xf32> to vector<64x128xf32>
    %22 = arith.addf %19, %21 : vector<64x128xf32>
    %cst_17 = arith.constant 0.000000e+00 : f32
    %23 = vector.broadcast %cst_17 : f32 to vector<64x128xf32>
    %24 = arith.maximumf %22, %23 : vector<64x128xf32>
    %25 = arith.truncf %24 : vector<64x128xf32> to vector<64x128xbf16>
    %c0_18 = arith.constant 0 : index
    %c0_19 = arith.constant 0 : index
    %26 = vector.load %arg8[%c0_18, %c0_19] : memref<5x64xbf16, #tpu.memory_space<vmem>>, vector<5x64xbf16>
    %cst_20 = arith.constant dense<0.000000e+00> : vector<5x128xf32>
    %27 = tpu.matmul %26, %25, %cst_20 {dimension_numbers = #tpu.dot_dimension_numbers<[1], [0], [0], [1], [0, 0, 1, 1], [], []>} : vector<5x64xbf16>, vector<64x128xbf16>, vector<5x128xf32> -> vector<5x128xf32>
    %c0_21 = arith.constant 0 : index
    %c0_22 = arith.constant 0 : index
    %28 = vector.load %arg9[%c0_21, %c0_22] : memref<5x1xf32, #tpu.memory_space<vmem>>, vector<5x1xf32>
    %29 = vector.broadcast %28 : vector<5x1xf32> to vector<5x128xf32>
    %30 = arith.addf %27, %29 : vector<5x128xf32>
    %c0_23 = arith.constant 0 : index
    %c0_24 = arith.constant 0 : index
    %31 = vector.load %arg10[%c0_23, %c0_24] : memref<5x128xf32, #tpu.memory_space<vmem>>, vector<5x128xf32>
    tpu.vector_store %arg10[%c0_23, %c0_24], %30 {strides = array<i32>} : memref<5x128xf32, #tpu.memory_space<vmem>>, vector<5x128xf32>,
    return
  }
  func.func @transform_0(%arg0: i32) -> (i32, i32) {
    %c0_i32 = arith.constant 0 : i32
    %c0_i32_0 = arith.constant 0 : i32
    return %c0_i32, %arg0 : i32, i32
  }
  func.func @transform_1(%arg0: i32) -> (i32, i32) {
    %c0_i32 = arith.constant 0 : i32
    %c0_i32_0 = arith.constant 0 : i32
    %c0_i32_1 = arith.constant 0 : i32
    return %c0_i32, %c0_i32_0 : i32, i32
  }
  func.func @transform_2(%arg0: i32) -> (i32, i32) {
    %c0_i32 = arith.constant 0 : i32
    %c0_i32_0 = arith.constant 0 : i32
    %c0_i32_1 = arith.constant 0 : i32
    return %c0_i32, %c0_i32_0 : i32, i32
  }
  func.func @transform_3(%arg0: i32) -> (i32, i32) {
    %c0_i32 = arith.constant 0 : i32
    %c0_i32_0 = arith.constant 0 : i32
    %c0_i32_1 = arith.constant 0 : i32
    return %c0_i32, %c0_i32_0 : i32, i32
  }
  func.func @transform_4(%arg0: i32) -> (i32, i32) {
    %c0_i32 = arith.constant 0 : i32
    %c0_i32_0 = arith.constant 0 : i32
    %c0_i32_1 = arith.constant 0 : i32
    return %c0_i32, %c0_i32_0 : i32, i32
  }
  func.func @transform_5(%arg0: i32) -> (i32, i32) {
    %c0_i32 = arith.constant 0 : i32
    %c0_i32_0 = arith.constant 0 : i32
    %c0_i32_1 = arith.constant 0 : i32
    return %c0_i32, %c0_i32_0 : i32, i32
  }
  func.func @transform_6(%arg0: i32) -> (i32, i32) {
    %c0_i32 = arith.constant 0 : i32
    %c0_i32_0 = arith.constant 0 : i32
    %c0_i32_1 = arith.constant 0 : i32
    return %c0_i32, %c0_i32_0 : i32, i32
  }
  func.func @transform_7(%arg0: i32) -> (i32, i32) {
    %c0_i32 = arith.constant 0 : i32
    %c0_i32_0 = arith.constant 0 : i32
    %c0_i32_1 = arith.constant 0 : i32
    return %c0_i32, %c0_i32_0 : i32, i32
  }
  func.func @transform_8(%arg0: i32) -> (i32, i32) {
    %c0_i32 = arith.constant 0 : i32
    %c0_i32_0 = arith.constant 0 : i32
    %c0_i32_1 = arith.constant 0 : i32
    return %c0_i32, %c0_i32_0 : i32, i32
  }
  func.func @transform_9(%arg0: i32) -> (i32, i32) {
    %c0_i32 = arith.constant 0 : i32
    %c0_i32_0 = arith.constant 0 : i32
    return %c0_i32, %arg0 : i32, i32
  }
}

</mosaic_0001>

<llo_original>
// kernel: tpu_custom_call.1
$region0: #{tpu_custom_call.1}
  #allocation0 [shape = 'u32[]', space=smem, size = 0x4, offset = 0x4, fixed_abs, tag = 'smem constant byte address 0x4 - core index']
  #allocation1 [shape = 'u32[144,128]{1,0:T(1,128)}', space=vmem, size = 0x12000, scoped, tag = 'internal scratch']
  %s0 = inlined_call_operand.vmem [shape: f32[8,256], index: 0, kind: input, shape index: {}]
  %s1 = inlined_call_operand.vmem [shape: bf16[12,8], index: 1, kind: input, shape index: {}]
  %s2 = inlined_call_operand.vmem [shape: f32[12,1], index: 2, kind: input, shape index: {}]
  %s3 = inlined_call_operand.vmem [shape: bf16[64,12], index: 3, kind: input, shape index: {}]
  %s4 = inlined_call_operand.vmem [shape: f32[64,1], index: 4, kind: input, shape index: {}]
  %s5 = inlined_call_operand.vmem [shape: bf16[64,64], index: 5, kind: input, shape index: {}]
  %s6 = inlined_call_operand.vmem [shape: f32[64,1], index: 6, kind: input, shape index: {}]
  %s7 = inlined_call_operand.vmem [shape: bf16[5,64], index: 7, kind: input, shape index: {}]
  %s8 = inlined_call_operand.vmem [shape: f32[5,1], index: 8, kind: input, shape index: {}]
  %s9 = inlined_call_operand.hbm [shape: f32[5,256], index: 9, kind: output, shape index: {}]
  %s10 = sld [smem:[#allocation0]]
  $region69: #{tpu_custom_call.1} parent=0
    _
  %s12 = ssub.s32 1, %s10
  %s13 = scalar_select 0, %s12, %s10
  $region1: #{tpu_custom_call.1} parent=0
    #allocation2 [shape = 'u8[8192]{0}', space=vmem, size = 0x2000, scoped, tag = 'output window, operand 0']
    #allocation3 [shape = 's32[2]{0}', space=sflag, size = 0x8, scoped, tag = 'scoped memory for tpu_custom_call.1']
    %14 = vsyncpa [#allocation3], 0
    %s15 = scalar_lea.sflag [#allocation3], 1
    %16 = vsyncpa %s15, 0
    loop: start=0, step=1, limit=4
    $region2: #{tpu_custom_call.1} parent=1 // loop_pre_header
      _
    $region3: #{tpu_custom_call.1} parent=1 // loop_header
      %s18 = sphi 0, %s22
      %p19 = scmp.ge.s32.totalorder %s18, 4
      %s28 = sphi 0, %s30
      %s31 = sphi 0, %s28
      %s32 = sphi 0, %s31
      %s48 = sphi 0, %s32
      %s52 = sphi 0, %s52
      %s54 = sphi 0, %s52
      %s55 = sphi 0, %s54
      %s69 = sphi 0, %s55
      %s73 = sphi 0, %s73
      %s75 = sphi 0, %s73
      %s76 = sphi 0, %s75
      %s90 = sphi 0, %s76
      %s94 = sphi 0, %s94
      %s96 = sphi 0, %s94
      %s97 = sphi 0, %s96
      %s111 = sphi 0, %s97
      %s115 = sphi 0, %s115
      %s117 = sphi 0, %s115
      %s118 = sphi 0, %s117
      %s132 = sphi 0, %s118
      %s136 = sphi 0, %s136
      %s138 = sphi 0, %s136
      %s139 = sphi 0, %s138
      %s153 = sphi 0, %s139
      %s157 = sphi 0, %s157
      %s159 = sphi 0, %s157
      %s160 = sphi 0, %s159
      %s174 = sphi 0, %s160
      %s178 = sphi 0, %s178
      %s180 = sphi 0, %s178
      %s181 = sphi 0, %s180
      %s195 = sphi 0, %s181
      %s199 = sphi 0, %s199
      %s201 = sphi 0, %s199
      %s202 = sphi 0, %s201
      %s216 = sphi 0, %s202
      %s222 = sphi 0, %s224
      %s225 = sphi 0, %s222
      %s226 = sphi 0, %s225
      %s242 = sphi 0, %s226
    $region4: #{tpu_custom_call.1} parent=1 // loop_header_branch
      %21 = sbr.rel (%p19) target = $region8
    $region5: #{tpu_custom_call.1} parent=1 // loop_body
      %s23 = ssub.s32 %s18, 1
      %s24 = ssub.s32 %s18, 2
      %s25 = sadd.s32 %s18, 1
      %s26 = ssub.s32 %s18, %s25
      %p27 = scmp.eq.s32.totalorder %s26, 0
      %s29 = sadd.s32 %s28, 1
      %s30 = scalar_select %p27, %s28, %s29
      %p33 = pneg %p27
      %p34 = scmp.eq.s32.totalorder %s18, 1
      %p35 = por %p33, %p34
      %p36 = scmp.ne.s32.totalorder %s28, %s31
      %p37 = scmp.eq.s32.totalorder %s18, 0
      %p38 = por %p36, %p37
      %p39 = scmp.ne.s32.totalorder %s28, %s31
      %p40 = scmp.eq.s32.totalorder %s23, 1
      %p41 = por %p39, %p40
      %p42 = scmp.ne.s32.totalorder %s31, %s32
      %p43 = scmp.eq.s32.totalorder %s23, 0
      %p44 = por %p42, %p43
      %p45 = scmp.ne.s32.totalorder %s31, %s32
      %p46 = scmp.eq.s32.totalorder %s24, 1
      %p47 = por %p45, %p46
      %p49 = scmp.ne.s32.totalorder %s32, %s48
      %p50 = scmp.eq.s32.totalorder %s24, 0
      %p51 = por %p49, %p50
      %s53 = sadd.s32 %s52, 1
      %p56 = scmp.eq.s32.totalorder %s18, 1
      %p57 = scmp.ne.s32.totalorder %s52, %s54
      %p58 = scmp.eq.s32.totalorder %s18, 0
      %p59 = por %p57, %p58
      %p60 = scmp.ne.s32.totalorder %s52, %s54
      %p61 = scmp.eq.s32.totalorder %s23, 1
      %p62 = por %p60, %p61
      %p63 = scmp.ne.s32.totalorder %s54, %s55
      %p64 = scmp.eq.s32.totalorder %s23, 0
      %p65 = por %p63, %p64
      %p66 = scmp.ne.s32.totalorder %s54, %s55
      %p67 = scmp.eq.s32.totalorder %s24, 1
      %p68 = por %p66, %p67
      %p70 = scmp.ne.s32.totalorder %s55, %s69
      %p71 = scmp.eq.s32.totalorder %s24, 0
      %p72 = por %p70, %p71
      %s74 = sadd.s32 %s73, 1
      %p77 = scmp.eq.s32.totalorder %s18, 1
      %p78 = scmp.ne.s32.totalorder %s73, %s75
      %p79 = scmp.eq.s32.totalorder %s18, 0
      %p80 = por %p78, %p79
      %p81 = scmp.ne.s32.totalorder %s73, %s75
      %p82 = scmp.eq.s32.totalorder %s23, 1
      %p83 = por %p81, %p82
      %p84 = scmp.ne.s32.totalorder %s75, %s76
      %p85 = scmp.eq.s32.totalorder %s23, 0
      %p86 = por %p84, %p85
      %p87 = scmp.ne.s32.totalorder %s75, %s76
      %p88 = scmp.eq.s32.totalorder %s24, 1
      %p89 = por %p87, %p88
      %p91 = scmp.ne.s32.totalorder %s76, %s90
      %p92 = scmp.eq.s32.totalorder %s24, 0
      %p93 = por %p91, %p92
      %s95 = sadd.s32 %s94, 1
      %p98 = scmp.eq.s32.totalorder %s18, 1
      %p99 = scmp.ne.s32.totalorder %s94, %s96
      %p100 = scmp.eq.s32.totalorder %s18, 0
      %p101 = por %p99, %p100
      %p102 = scmp.ne.s32.totalorder %s94, %s96
      %p103 = scmp.eq.s32.totalorder %s23, 1
      %p104 = por %p102, %p103
      %p105 = scmp.ne.s32.totalorder %s96, %s97
      %p106 = scmp.eq.s32.totalorder %s23, 0
      %p107 = por %p105, %p106
      %p108 = scmp.ne.s32.totalorder %s96, %s97
      %p109 = scmp.eq.s32.totalorder %s24, 1
      %p110 = por %p108, %p109
      %p112 = scmp.ne.s32.totalorder %s97, %s111
      %p113 = scmp.eq.s32.totalorder %s24, 0
      %p114 = por %p112, %p113
      %s116 = sadd.s32 %s115, 1
      %p119 = scmp.eq.s32.totalorder %s18, 1
      %p120 = scmp.ne.s32.totalorder %s115, %s117
      %p121 = scmp.eq.s32.totalorder %s18, 0
      %p122 = por %p120, %p121
      %p123 = scmp.ne.s32.totalorder %s115, %s117
      %p124 = scmp.eq.s32.totalorder %s23, 1
      %p125 = por %p123, %p124
      %p126 = scmp.ne.s32.totalorder %s117, %s118
      %p127 = scmp.eq.s32.totalorder %s23, 0
      %p128 = por %p126, %p127
      %p129 = scmp.ne.s32.totalorder %s117, %s118
      %p130 = scmp.eq.s32.totalorder %s24, 1
      %p131 = por %p129, %p130
      %p133 = scmp.ne.s32.totalorder %s118, %s132
      %p134 = scmp.eq.s32.totalorder %s24, 0
      %p135 = por %p133, %p134
      %s137 = sadd.s32 %s136, 1
      %p140 = scmp.eq.s32.totalorder %s18, 1
      %p141 = scmp.ne.s32.totalorder %s136, %s138
      %p142 = scmp.eq.s32.totalorder %s18, 0
      %p143 = por %p141, %p142
      %p144 = scmp.ne.s32.totalorder %s136, %s138
      %p145 = scmp.eq.s32.totalorder %s23, 1
      %p146 = por %p144, %p145
      %p147 = scmp.ne.s32.totalorder %s138, %s139
      %p148 = scmp.eq.s32.totalorder %s23, 0
      %p149 = por %p147, %p148
      %p150 = scmp.ne.s32.totalorder %s138, %s139
      %p151 = scmp.eq.s32.totalorder %s24, 1
      %p152 = por %p150, %p151
      %p154 = scmp.ne.s32.totalorder %s139, %s153
      %p155 = scmp.eq.s32.totalorder %s24, 0
      %p156 = por %p154, %p155
      %s158 = sadd.s32 %s157, 1
      %p161 = scmp.eq.s32.totalorder %s18, 1
      %p162 = scmp.ne.s32.totalorder %s157, %s159
      %p163 = scmp.eq.s32.totalorder %s18, 0
      %p164 = por %p162, %p163
      %p165 = scmp.ne.s32.totalorder %s157, %s159
      %p166 = scmp.eq.s32.totalorder %s23, 1
      %p167 = por %p165, %p166
      %p168 = scmp.ne.s32.totalorder %s159, %s160
      %p169 = scmp.eq.s32.totalorder %s23, 0
      %p170 = por %p168, %p169
      %p171 = scmp.ne.s32.totalorder %s159, %s160
      %p172 = scmp.eq.s32.totalorder %s24, 1
      %p173 = por %p171, %p172
      %p175 = scmp.ne.s32.totalorder %s160, %s174
      %p176 = scmp.eq.s32.totalorder %s24, 0
      %p177 = por %p175, %p176
      %s179 = sadd.s32 %s178, 1
      %p182 = scmp.eq.s32.totalorder %s18, 1
      %p183 = scmp.ne.s32.totalorder %s178, %s180
      %p184 = scmp.eq.s32.totalorder %s18, 0
      %p185 = por %p183, %p184
      %p186 = scmp.ne.s32.totalorder %s178, %s180
      %p187 = scmp.eq.s32.totalorder %s23, 1
      %p188 = por %p186, %p187
      %p189 = scmp.ne.s32.totalorder %s180, %s181
      %p190 = scmp.eq.s32.totalorder %s23, 0
      %p191 = por %p189, %p190
      %p192 = scmp.ne.s32.totalorder %s180, %s181
      %p193 = scmp.eq.s32.totalorder %s24, 1
      %p194 = por %p192, %p193
      %p196 = scmp.ne.s32.totalorder %s181, %s195
      %p197 = scmp.eq.s32.totalorder %s24, 0
      %p198 = por %p196, %p197
      %s200 = sadd.s32 %s199, 1
      %p203 = scmp.eq.s32.totalorder %s18, 1
      %p204 = scmp.ne.s32.totalorder %s199, %s201
      %p205 = scmp.eq.s32.totalorder %s18, 0
      %p206 = por %p204, %p205
      %p207 = scmp.ne.s32.totalorder %s199, %s201
      %p208 = scmp.eq.s32.totalorder %s23, 1
      %p209 = por %p207, %p208
      %p210 = scmp.ne.s32.totalorder %s201, %s202
      %p211 = scmp.eq.s32.totalorder %s23, 0
      %p212 = por %p210, %p211
      %p213 = scmp.ne.s32.totalorder %s201, %s202
      %p214 = scmp.eq.s32.totalorder %s24, 1
      %p215 = por %p213, %p214
      %p217 = scmp.ne.s32.totalorder %s202, %s216
      %p218 = scmp.eq.s32.totalorder %s24, 0
      %p219 = por %p217, %p218
      %s220 = ssub.s32 %s18, %s25
      %p221 = scmp.eq.s32.totalorder %s220, 0
      %s223 = sadd.s32 %s222, 1
      %s224 = scalar_select %p221, %s222, %s223
      %p227 = pneg %p221
      %p228 = scmp.eq.s32.totalorder %s18, 1
      %p229 = por %p227, %p228
      %p230 = scmp.ne.s32.totalorder %s222, %s225
      %p231 = scmp.eq.s32.totalorder %s18, 0
      %p232 = por %p230, %p231
      %p233 = scmp.ne.s32.totalorder %s222, %s225
      %p234 = scmp.eq.s32.totalorder %s23, 1
      %p235 = por %p233, %p234
      %p236 = scmp.ne.s32.totalorder %s225, %s226
      %p237 = scmp.eq.s32.totalorder %s23, 0
      %p238 = por %p236, %p237
      %p239 = scmp.ne.s32.totalorder %s225, %s226
      %p240 = scmp.eq.s32.totalorder %s24, 1
      %p241 = por %p239, %p240
      %p243 = scmp.ne.s32.totalorder %s226, %s242
      %p244 = scmp.eq.s32.totalorder %s24, 0
      %p245 = por %p243, %p244
      %p246 = scmp.le.s32.totalorder 1, %s18
      %p247 = scmp.lt.s32.totalorder %s18, 3
      %p248 = pnand %p246, %p247
      %p249 = pneg %p248
      // Predicated region
      $region9: #{tpu_custom_call.1} parent=5 // pred_check
        _
      $region10: #{tpu_custom_call.1} parent=5 // pred_check_branch
        %251 = sbr.rel (%p248) target = $region12
      $region11: #{tpu_custom_call.1} parent=5 // pred_region
        %s252 = ssub.s32 %s18, 1
        // Predicated region
        $region13: #{tpu_custom_call.1} parent=11 // pred_check
          %p253 = pneg %p65
        $region14: #{tpu_custom_call.1} parent=11 // pred_check_branch
          %255 = sbr.rel (%p253) target = $region16
        $region15: #{tpu_custom_call.1} parent=11 // pred_region
          _
        $region16: #{tpu_custom_call.1} parent=11 // pred_fallthru
          _
        // Predicated region
        $region17: #{tpu_custom_call.1} parent=11 // pred_check
          %p256 = pneg %p86
        $region18: #{tpu_custom_call.1} parent=11 // pred_check_branch
          %258 = sbr.rel (%p256) target = $region20
        $region19: #{tpu_custom_call.1} parent=11 // pred_region
          _
        $region20: #{tpu_custom_call.1} parent=11 // pred_fallthru
          _
        // Predicated region
        $region21: #{tpu_custom_call.1} parent=11 // pred_check
          %p259 = pneg %p107
        $region22: #{tpu_custom_call.1} parent=11 // pred_check_branch
          %261 = sbr.rel (%p259) target = $region24
        $region23: #{tpu_custom_call.1} parent=11 // pred_region
          _
        $region24: #{tpu_custom_call.1} parent=11 // pred_fallthru
          _
        // Predicated region
        $region25: #{tpu_custom_call.1} parent=11 // pred_check
          %p262 = pneg %p128
        $region26: #{tpu_custom_call.1} parent=11 // pred_check_branch
          %264 = sbr.rel (%p262) target = $region28
        $region27: #{tpu_custom_call.1} parent=11 // pred_region
          _
        $region28: #{tpu_custom_call.1} parent=11 // pred_fallthru
          _
        // Predicated region
        $region29: #{tpu_custom_call.1} parent=11 // pred_check
          %p265 = pneg %p149
        $region30: #{tpu_custom_call.1} parent=11 // pred_check_branch
          %267 = sbr.rel (%p265) target = $region32
        $region31: #{tpu_custom_call.1} parent=11 // pred_region
          _
        $region32: #{tpu_custom_call.1} parent=11 // pred_fallthru
          _
        // Predicated region
        $region33: #{tpu_custom_call.1} parent=11 // pred_check
          %p268 = pneg %p170
        $region34: #{tpu_custom_call.1} parent=11 // pred_check_branch
          %270 = sbr.rel (%p268) target = $region36
        $region35: #{tpu_custom_call.1} parent=11 // pred_region
          _
        $region36: #{tpu_custom_call.1} parent=11 // pred_fallthru
          _
        // Predicated region
        $region37: #{tpu_custom_call.1} parent=11 // pred_check
          %p271 = pneg %p191
        $region38: #{tpu_custom_call.1} parent=11 // pred_check_branch
          %273 = sbr.rel (%p271) target = $region40
        $region39: #{tpu_custom_call.1} parent=11 // pred_region
          _
        $region40: #{tpu_custom_call.1} parent=11 // pred_fallthru
          _
        // Predicated region
        $region41: #{tpu_custom_call.1} parent=11 // pred_check
          %p274 = pneg %p212
        $region42: #{tpu_custom_call.1} parent=11 // pred_check_branch
          %276 = sbr.rel (%p274) target = $region44
        $region43: #{tpu_custom_call.1} parent=11 // pred_region
          _
        $region44: #{tpu_custom_call.1} parent=11 // pred_fallthru
          _
      $region12: #{tpu_custom_call.1} parent=5 // pred_fallthru
        _
      %p277 = scmp.lt.s32.totalorder %s18, 2
      // Predicated region
      $region45: #{tpu_custom_call.1} parent=5 // pred_check
        %p278 = pneg %p277
      $region46: #{tpu_custom_call.1} parent=5 // pred_check_branch
        %280 = sbr.rel (%p278) target = $region48
      $region47: #{tpu_custom_call.1} parent=5 // pred_region
        // Predicated region
        $region49: #{tpu_custom_call.1} parent=47 // pred_check
          %p281 = pneg %p38
        $region50: #{tpu_custom_call.1} parent=47 // pred_check_branch
          %283 = sbr.rel (%p281) target = $region52
        $region51: #{tpu_custom_call.1} parent=47 // pred_region
          %p284 = scmp.lt.s32.totalorder %s18, 1
          %s285 = scalar_select %p284, %s18, 1
          %s286 = smul.addr %s285, 8
          %s287 = scalar_lea.vmem %s0, %s286
        $region52: #{tpu_custom_call.1} parent=47 // pred_fallthru
          _
      $region48: #{tpu_custom_call.1} parent=5 // pred_fallthru
        _
      %p288 = scmp.le.s32.totalorder 1, %s18
      %p289 = scmp.lt.s32.totalorder %s18, 3
      %p290 = pnand %p288, %p289
      %p291 = pneg %p290
      // Predicated region
      $region53: #{tpu_custom_call.1} parent=5 // pred_check
        _
      $region54: #{tpu_custom_call.1} parent=5 // pred_check_branch
        %293 = sbr.rel (%p290) target = $region56
      $region55: #{tpu_custom_call.1} parent=5 // pred_region
        %s294 = ssub.s32 %s18, 1
        %p295 = scmp.lt.s32.totalorder %s23, 1
        %s296 = scalar_select %p295, %s23, 1
        %s297 = smul.addr %s296, 8
        %s298 = scalar_lea.vmem %s0, %s297
        %p299 = pneg %p44
        %p300 = pneg %p41
        %p301 = pneg %p65
        %p302 = pneg %p62
        %p303 = pneg %p86
        %p304 = pneg %p83
        %p305 = pneg %p107
        %p306 = pneg %p104
        %p307 = pneg %p128
        %p308 = pneg %p125
        %p309 = pneg %p149
        %p310 = pneg %p146
        %p311 = pneg %p170
        %p312 = pneg %p167
        %p313 = pneg %p191
        %p314 = pneg %p188
        %p315 = pneg %p212
        %p316 = pneg %p209
        %p317 = pneg %p238
        %p318 = pneg %p235
        %s319 = sand.u32 %s225, 1
        %s320 = scalar_lea.sflag [#allocation3], %s319
        %s321 = sand.u32 %s225, 1
        %s322 = smul.addr %s321, 8
        %s323 = scalar_lea.vmem [#allocation2], %s322
        %p324 = scmp.lt.s32.totalorder %s23, 1
        %s325 = scalar_select %p324, %s23, 1
        %s326 = smul.addr %s325, 8
        %s327 = scalar_lea.vmem %s0, %s326
        %v329 = vld [vmem:[%s327] sm:$0xff]
        %v330 = vpack.c.bf16 %v329, %v329
        %v331 = vld [vmem:[%s1] sm:$0xf]
        %v332 = vld [vmem:[%s1 + $0x4] sm:$0x3]
        %v333 = vld [vmem:[%s2] sm:$0xff]
        %v334 = vld [vmem:[%s2 + $0x8] sm:$0xf]
        %336 = vset.pattern.permute.xlu0 0
        %337 = vperm.xlu0 %336, %v333
        %v338 = vpop.permute.xlu0 %337
        %341 = vset.pattern.permute.xlu0 0
        %342 = vperm.xlu0 %341, %v334
        %v343 = vpop.permute.xlu0 %342
        %v347 = vunpack.c.l.b16 %v331
        %v348 = vunpack.c.l.b16 %v332
        %v349 = vpack.c.b16 %v348, %v347
        %vm350 = vcmask 64512
        %v352 = vsel %vm350, %v349, 0
        %vm354 = vcmask 1043456
        %v356 = vsel %vm354, %v330, 0
        %358 = vmatprep.subr.bf16.mxu0 0
        %359 = vmatpush1.bf16.msra.mxu0 %v356
        %360 = vmatprep.subr.bf16.mxu0 0
        %361 = vmatpush1.bf16.msra.mxu0 0
        %362 = vmatprep.subr.bf16.mxu0 0
        %363 = vmatpush1.bf16.msra.mxu0 0
        %364 = vmatprep.subr.bf16.mxu0 0
        %365 = vmatpush1.bf16.msra.mxu0 0
        %366 = vmatprep.subr.bf16.mxu0 0
        %367 = vmatpush1.bf16.msra.mxu0 0
        %368 = vmatprep.subr.bf16.mxu0 0
        %369 = vmatpush1.bf16.msra.mxu0 0
        %370 = vmatprep.subr.bf16.mxu0 0
        %371 = vmatpush1.bf16.msra.mxu0 0
        %372 = vmatprep.subr.bf16.mxu0 0
        %373 = vmatpush1.bf16.msra.mxu0 0
        %374 = vmatprep.subr.bf16.mxu0 0
        %375 = vmatpush1.bf16.msra.mxu0 0
        %376 = vmatprep.subr.bf16.mxu0 0
        %377 = vmatpush1.bf16.msra.mxu0 0
        %378 = vmatprep.subr.bf16.mxu0 0
        %379 = vmatpush1.bf16.msra.mxu0 0
        %380 = vmatprep.subr.bf16.mxu0 0
        %381 = vmatpush1.bf16.msra.mxu0 0
        %382 = vmatprep.subr.bf16.mxu0 0
        %383 = vmatpush1.bf16.msra.mxu0 0
        %384 = vmatprep.subr.bf16.mxu0 0
        %385 = vmatpush1.bf16.msra.mxu0 0
        %386 = vmatprep.subr.bf16.mxu0 0
        %387 = vmatpush1.bf16.msra.mxu0 0
        %388 = vmatprep.subr.bf16.mxu0 0
        %389 = vmatpush1.bf16.msra.mxu0 0
        %390 = vmatprep.mubr.bf16.mxu0 0
        %391 = vmatmul.mubr.bf16.gmra.mrb[0].mxu0 %v352
        %v392 = vpop.f32.mrb[0].mxu0
        %v393 = vadd.f32 %v338, %v392
        %v394 = vpop.f32.mrb[0].mxu0
        %v395 = vpop.f32.mrb[0].mxu0
        %v396 = vadd.f32 %v343, %v395
        %v397 = vpop.f32.mrb[0].mxu0
        %398 = vdwg.mxu0
        %v399 = vmax.f32 %v393, 0.0
        %v400 = vmax.f32 %v396, 0.0
        %v401 = vpack.c.bf16 %v400, %v399
        %v402 = vld [vmem:[%s3] sm:$0xf]
        %v403 = vld [vmem:[%s3 + $0x4] sm:$0xf]
        %v404 = vld [vmem:[%s3 + $0x8] sm:$0xf]
        %v405 = vld [vmem:[%s3 + $0xc] sm:$0xf]
        %v406 = vld [vmem:[%s3 + $0x10] sm:$0xf]
        %v407 = vld [vmem:[%s3 + $0x14] sm:$0xf]
        %v408 = vld [vmem:[%s3 + $0x18] sm:$0xf]
        %v409 = vld [vmem:[%s3 + $0x1c] sm:$0xf]
        %v410 = vld [vmem:[%s4] sm:$0xff]
        %v411 = vld [vmem:[%s4 + $0x8] sm:$0xff]
        %v412 = vld [vmem:[%s4 + $0x10] sm:$0xff]
        %v413 = vld [vmem:[%s4 + $0x18] sm:$0xff]
        %v414 = vld [vmem:[%s4 + $0x20] sm:$0xff]
        %v415 = vld [vmem:[%s4 + $0x28] sm:$0xff]
        %v416 = vld [vmem:[%s4 + $0x30] sm:$0xff]
        %v417 = vld [vmem:[%s4 + $0x38] sm:$0xff]
        %419 = vset.pattern.permute.xlu0 0
        %420 = vperm.xlu0 %419, %v410
        %v421 = vpop.permute.xlu0 %420
        %424 = vset.pattern.permute.xlu0 0
        %425 = vperm.xlu0 %424, %v411
        %v426 = vpop.permute.xlu0 %425
        %429 = vset.pattern.permute.xlu0 0
        %430 = vperm.xlu0 %429, %v412
        %v431 = vpop.permute.xlu0 %430
        %434 = vset.pattern.permute.xlu0 0
        %435 = vperm.xlu0 %434, %v413
        %v436 = vpop.permute.xlu0 %435
        %439 = vset.pattern.permute.xlu0 0
        %440 = vperm.xlu0 %439, %v414
        %v441 = vpop.permute.xlu0 %440
        %444 = vset.pattern.permute.xlu0 0
        %445 = vperm.xlu0 %444, %v415
        %v446 = vpop.permute.xlu0 %445
        %449 = vset.pattern.permute.xlu0 0
        %450 = vperm.xlu0 %449, %v416
        %v451 = vpop.permute.xlu0 %450
        %454 = vset.pattern.permute.xlu0 0
        %455 = vperm.xlu0 %454, %v417
        %v456 = vpop.permute.xlu0 %455
        %v466 = vunpack.c.l.b16 %v402
        %v467 = vunpack.c.l.b16 %v403
        %v468 = vunpack.c.l.b16 %v404
        %v469 = vunpack.c.l.b16 %v405
        %v470 = vunpack.c.l.b16 %v406
        %v471 = vunpack.c.l.b16 %v407
        %v472 = vunpack.c.l.b16 %v408
        %v473 = vunpack.c.l.b16 %v409
        %v474 = vpack.c.b16 %v467, %v466
        %v475 = vpack.c.b16 %v469, %v468
        %v476 = vpack.c.b16 %v471, %v470
        %v477 = vpack.c.b16 %v473, %v472
        %vm478 = vcmask 97280
        %v480 = vsel %vm478, %v474, 0
        %v483 = vsel %vm478, %v475, 0
        %v486 = vsel %vm478, %v476, 0
        %v489 = vsel %vm478, %v477, 0
        %vm491 = vcmask 1045504
        %v493 = vsel %vm491, %v401, 0
        %495 = vmatprep.subr.bf16.mxu0 0
        %496 = vmatpush1.bf16.msra.mxu0 %v493
        %497 = vmatprep.subr.bf16.mxu0 0
        %498 = vmatpush1.bf16.msra.mxu0 0
        %499 = vmatprep.subr.bf16.mxu0 0
        %500 = vmatpush1.bf16.msra.mxu0 0
        %501 = vmatprep.subr.bf16.mxu0 0
        %502 = vmatpush1.bf16.msra.mxu0 0
        %503 = vmatprep.subr.bf16.mxu0 0
        %504 = vmatpush1.bf16.msra.mxu0 0
        %505 = vmatprep.subr.bf16.mxu0 0
        %506 = vmatpush1.bf16.msra.mxu0 0
        %507 = vmatprep.subr.bf16.mxu0 0
        %508 = vmatpush1.bf16.msra.mxu0 0
        %509 = vmatprep.subr.bf16.mxu0 0
        %510 = vmatpush1.bf16.msra.mxu0 0
        %511 = vmatprep.subr.bf16.mxu0 0
        %512 = vmatpush1.bf16.msra.mxu0 0
        %513 = vmatprep.subr.bf16.mxu0 0
        %514 = vmatpush1.bf16.msra.mxu0 0
        %515 = vmatprep.subr.bf16.mxu0 0
        %516 = vmatpush1.bf16.msra.mxu0 0
        %517 = vmatprep.subr.bf16.mxu0 0
        %518 = vmatpush1.bf16.msra.mxu0 0
        %519 = vmatprep.subr.bf16.mxu0 0
        %520 = vmatpush1.bf16.msra.mxu0 0
        %521 = vmatprep.subr.bf16.mxu0 0
        %522 = vmatpush1.bf16.msra.mxu0 0
        %523 = vmatprep.subr.bf16.mxu0 0
        %524 = vmatpush1.bf16.msra.mxu0 0
        %525 = vmatprep.subr.bf16.mxu0 0
        %526 = vmatpush1.bf16.msra.mxu0 0
        %527 = vmatprep.mubr.bf16.mxu0 0
        %528 = vmatmul.mubr.bf16.gmra.mrb[0].mxu0 %v480
        %v529 = vpop.f32.mrb[0].mxu0
        %v530 = vadd.f32 %v421, %v529
        %v531 = vpop.f32.mrb[0].mxu0
        %v532 = vpop.f32.mrb[0].mxu0
        %v533 = vadd.f32 %v426, %v532
        %v534 = vpop.f32.mrb[0].mxu0
        %535 = vmatprep.mubr.bf16.mxu0 0
        %536 = vmatmul.mubr.bf16.gmra.mrb[0].mxu0 %v483
        %v537 = vpop.f32.mrb[0].mxu0
        %v538 = vadd.f32 %v431, %v537
        %v539 = vpop.f32.mrb[0].mxu0
        %v540 = vpop.f32.mrb[0].mxu0
        %v541 = vadd.f32 %v436, %v540
        %v542 = vpop.f32.mrb[0].mxu0
        %543 = vmatprep.mubr.bf16.mxu0 0
        %544 = vmatmul.mubr.bf16.gmra.mrb[0].mxu0 %v486
        %v545 = vpop.f32.mrb[0].mxu0
        %v546 = vadd.f32 %v441, %v545
        %v547 = vpop.f32.mrb[0].mxu0
        %v548 = vpop.f32.mrb[0].mxu0
        %v549 = vadd.f32 %v446, %v548
        %v550 = vpop.f32.mrb[0].mxu0
        %551 = vmatprep.mubr.bf16.mxu0 0
        %552 = vmatmul.mubr.bf16.gmra.mrb[0].mxu0 %v489
        %v553 = vpop.f32.mrb[0].mxu0
        %v554 = vadd.f32 %v451, %v553
        %v555 = vpop.f32.mrb[0].mxu0
        %v556 = vpop.f32.mrb[0].mxu0
        %v557 = vadd.f32 %v456, %v556
        %v558 = vpop.f32.mrb[0].mxu0
        %559 = vdwg.mxu0
        %v560 = vmax.f32 %v530, 0.0
        %v561 = vmax.f32 %v533, 0.0
        %v562 = vmax.f32 %v538, 0.0
        %v563 = vmax.f32 %v541, 0.0
        %v564 = vmax.f32 %v546, 0.0
        %v565 = vmax.f32 %v549, 0.0
        %v566 = vmax.f32 %v554, 0.0
        %v567 = vmax.f32 %v557, 0.0
        %v568 = vpack.c.bf16 %v561, %v560
        %v569 = vpack.c.bf16 %v563, %v562
        %v570 = vpack.c.bf16 %v565, %v564
        %v571 = vpack.c.bf16 %v567, %v566
        %v572 = vld [vmem:[%s5] sm:$0xf]
        %v573 = vld [vmem:[%s5 + $0x4] sm:$0xf]
        %v574 = vld [vmem:[%s5 + $0x8] sm:$0xf]
        %v575 = vld [vmem:[%s5 + $0xc] sm:$0xf]
        %v576 = vld [vmem:[%s5 + $0x10] sm:$0xf]
        %v577 = vld [vmem:[%s5 + $0x14] sm:$0xf]
        %v578 = vld [vmem:[%s5 + $0x18] sm:$0xf]
        %v579 = vld [vmem:[%s5 + $0x1c] sm:$0xf]
        %v580 = vld [vmem:[%s6] sm:$0xff]
        %v581 = vld [vmem:[%s6 + $0x8] sm:$0xff]
        %v582 = vld [vmem:[%s6 + $0x10] sm:$0xff]
        %v583 = vld [vmem:[%s6 + $0x18] sm:$0xff]
        %v584 = vld [vmem:[%s6 + $0x20] sm:$0xff]
        %v585 = vld [vmem:[%s6 + $0x28] sm:$0xff]
        %v586 = vld [vmem:[%s6 + $0x30] sm:$0xff]
        %v587 = vld [vmem:[%s6 + $0x38] sm:$0xff]
        %589 = vset.pattern.permute.xlu0 0
        %590 = vperm.xlu0 %589, %v580
        %v591 = vpop.permute.xlu0 %590
        %594 = vset.pattern.permute.xlu0 0
        %595 = vperm.xlu0 %594, %v581
        %v596 = vpop.permute.xlu0 %595
        %599 = vset.pattern.permute.xlu0 0
        %600 = vperm.xlu0 %599, %v582
        %v601 = vpop.permute.xlu0 %600
        %604 = vset.pattern.permute.xlu0 0
        %605 = vperm.xlu0 %604, %v583
        %v606 = vpop.permute.xlu0 %605
        %609 = vset.pattern.permute.xlu0 0
        %610 = vperm.xlu0 %609, %v584
        %v611 = vpop.permute.xlu0 %610
        %614 = vset.pattern.permute.xlu0 0
        %615 = vperm.xlu0 %614, %v585
        %v616 = vpop.permute.xlu0 %615
        %619 = vset.pattern.permute.xlu0 0
        %620 = vperm.xlu0 %619, %v586
        %v621 = vpop.permute.xlu0 %620
        %624 = vset.pattern.permute.xlu0 0
        %625 = vperm.xlu0 %624, %v587
        %v626 = vpop.permute.xlu0 %625
        %v636 = vunpack.c.l.b16 %v572
        %v637 = vunpack.c.l.b16 %v573
        %v638 = vunpack.c.l.b16 %v574
        %v639 = vunpack.c.l.b16 %v575
        %v640 = vunpack.c.l.b16 %v576
        %v641 = vunpack.c.l.b16 %v577
        %v642 = vunpack.c.l.b16 %v578
        %v643 = vunpack.c.l.b16 %v579
        %v644 = vpack.c.b16 %v637, %v636
        %v645 = vpack.c.b16 %v639, %v638
        %v646 = vpack.c.b16 %v641, %v640
        %v647 = vpack.c.b16 %v643, %v642
        %vm648 = vcmask 523264
        %v650 = vsel %vm648, %v644, 0
        %v653 = vsel %vm648, %v645, 0
        %v656 = vsel %vm648, %v646, 0
        %v659 = vsel %vm648, %v647, 0
        %661 = vmatprep.subr.bf16.mxu0 0
        %662 = vmatpush1.bf16.msra.mxu0 %v568
        %663 = vmatprep.subr.bf16.mxu0 0
        %664 = vmatpush1.bf16.msra.mxu0 %v569
        %665 = vmatprep.subr.bf16.mxu0 0
        %666 = vmatpush1.bf16.msra.mxu0 %v570
        %667 = vmatprep.subr.bf16.mxu0 0
        %668 = vmatpush1.bf16.msra.mxu0 %v571
        %669 = vmatprep.subr.bf16.mxu0 0
        %670 = vmatpush1.bf16.msra.mxu0 0
        %671 = vmatprep.subr.bf16.mxu0 0
        %672 = vmatpush1.bf16.msra.mxu0 0
        %673 = vmatprep.subr.bf16.mxu0 0
        %674 = vmatpush1.bf16.msra.mxu0 0
        %675 = vmatprep.subr.bf16.mxu0 0
        %676 = vmatpush1.bf16.msra.mxu0 0
        %677 = vmatprep.subr.bf16.mxu0 0
        %678 = vmatpush1.bf16.msra.mxu0 0
        %679 = vmatprep.subr.bf16.mxu0 0
        %680 = vmatpush1.bf16.msra.mxu0 0
        %681 = vmatprep.subr.bf16.mxu0 0
        %682 = vmatpush1.bf16.msra.mxu0 0
        %683 = vmatprep.subr.bf16.mxu0 0
        %684 = vmatpush1.bf16.msra.mxu0 0
        %685 = vmatprep.subr.bf16.mxu0 0
        %686 = vmatpush1.bf16.msra.mxu0 0
        %687 = vmatprep.subr.bf16.mxu0 0
        %688 = vmatpush1.bf16.msra.mxu0 0
        %689 = vmatprep.subr.bf16.mxu0 0
        %690 = vmatpush1.bf16.msra.mxu0 0
        %691 = vmatprep.subr.bf16.mxu0 0
        %692 = vmatpush1.bf16.msra.mxu0 0
        %693 = vmatprep.mubr.bf16.mxu0 0
        %694 = vmatmul.mubr.bf16.gmra.mrb[0].mxu0 %v650
        %v695 = vpop.f32.mrb[0].mxu0
        %v696 = vadd.f32 %v591, %v695
        %v697 = vpop.f32.mrb[0].mxu0
        %v698 = vpop.f32.mrb[0].mxu0
        %v699 = vadd.f32 %v596, %v698
        %v700 = vpop.f32.mrb[0].mxu0
        %701 = vmatprep.mubr.bf16.mxu0 0
        %702 = vmatmul.mubr.bf16.gmra.mrb[0].mxu0 %v653
        %v703 = vpop.f32.mrb[0].mxu0
        %v704 = vadd.f32 %v601, %v703
        %v705 = vpop.f32.mrb[0].mxu0
        %v706 = vpop.f32.mrb[0].mxu0
        %v707 = vadd.f32 %v606, %v706
        %v708 = vpop.f32.mrb[0].mxu0
        %709 = vmatprep.mubr.bf16.mxu0 0
        %710 = vmatmul.mubr.bf16.gmra.mrb[0].mxu0 %v656
        %v711 = vpop.f32.mrb[0].mxu0
        %v712 = vadd.f32 %v611, %v711
        %v713 = vpop.f32.mrb[0].mxu0
        %v714 = vpop.f32.mrb[0].mxu0
        %v715 = vadd.f32 %v616, %v714
        %v716 = vpop.f32.mrb[0].mxu0
        %717 = vmatprep.mubr.bf16.mxu0 0
        %718 = vmatmul.mubr.bf16.gmra.mrb[0].mxu0 %v659
        %v719 = vpop.f32.mrb[0].mxu0
        %v720 = vadd.f32 %v621, %v719
        %v721 = vpop.f32.mrb[0].mxu0
        %v722 = vpop.f32.mrb[0].mxu0
        %v723 = vadd.f32 %v626, %v722
        %v724 = vpop.f32.mrb[0].mxu0
        %725 = vdwg.mxu0
        %v726 = vmax.f32 %v696, 0.0
        %v727 = vmax.f32 %v699, 0.0
        %v728 = vmax.f32 %v704, 0.0
        %v729 = vmax.f32 %v707, 0.0
        %v730 = vmax.f32 %v712, 0.0
        %v731 = vmax.f32 %v715, 0.0
        %v732 = vmax.f32 %v720, 0.0
        %v733 = vmax.f32 %v723, 0.0
        %v734 = vpack.c.bf16 %v727, %v726
        %v735 = vpack.c.bf16 %v729, %v728
        %v736 = vpack.c.bf16 %v731, %v730
        %v737 = vpack.c.bf16 %v733, %v732
        %v738 = vld [vmem:[%s7] sm:$0x7]
        %v739 = vld [vmem:[%s8] sm:$0x1f]
        %741 = vset.pattern.permute.xlu0 0
        %742 = vperm.xlu0 %741, %v739
        %v743 = vpop.permute.xlu0 %742
        %v746 = vsel %vm648, %v738, 0
        %748 = vmatprep.subr.bf16.mxu0 0
        %749 = vmatpush1.bf16.msra.mxu0 %v734
        %750 = vmatprep.subr.bf16.mxu0 0
        %751 = vmatpush1.bf16.msra.mxu0 %v735
        %752 = vmatprep.subr.bf16.mxu0 0
        %753 = vmatpush1.bf16.msra.mxu0 %v736
        %754 = vmatprep.subr.bf16.mxu0 0
        %755 = vmatpush1.bf16.msra.mxu0 %v737
        %756 = vmatprep.subr.bf16.mxu0 0
        %757 = vmatpush1.bf16.msra.mxu0 0
        %758 = vmatprep.subr.bf16.mxu0 0
        %759 = vmatpush1.bf16.msra.mxu0 0
        %760 = vmatprep.subr.bf16.mxu0 0
        %761 = vmatpush1.bf16.msra.mxu0 0
        %762 = vmatprep.subr.bf16.mxu0 0
        %763 = vmatpush1.bf16.msra.mxu0 0
        %764 = vmatprep.subr.bf16.mxu0 0
        %765 = vmatpush1.bf16.msra.mxu0 0
        %766 = vmatprep.subr.bf16.mxu0 0
        %767 = vmatpush1.bf16.msra.mxu0 0
        %768 = vmatprep.subr.bf16.mxu0 0
        %769 = vmatpush1.bf16.msra.mxu0 0
        %770 = vmatprep.subr.bf16.mxu0 0
        %771 = vmatpush1.bf16.msra.mxu0 0
        %772 = vmatprep.subr.bf16.mxu0 0
        %773 = vmatpush1.bf16.msra.mxu0 0
        %774 = vmatprep.subr.bf16.mxu0 0
        %775 = vmatpush1.bf16.msra.mxu0 0
        %776 = vmatprep.subr.bf16.mxu0 0
        %777 = vmatpush1.bf16.msra.mxu0 0
        %778 = vmatprep.subr.bf16.mxu0 0
        %779 = vmatpush1.bf16.msra.mxu0 0
        %780 = vmatprep.mubr.bf16.mxu0 0
        %781 = vmatmul.mubr.bf16.gmra.mrb[0].mxu0 %v746
        %v782 = vpop.f32.mrb[0].mxu0
        %v783 = vadd.f32 %v743, %v782
        %v784 = vpop.f32.mrb[0].mxu0
        %v785 = vpop.f32.mrb[0].mxu0
        %v786 = vpop.f32.mrb[0].mxu0
        %787 = vdwg.mxu0
        %788 = vst [vmem:[%s323] sm:$0x1f] %v783
        %s789 = sand.u32 %s225, 1
        %s790 = scalar_lea.sflag [#allocation3], %s789
        %s791 = sand.u32 %s225, 1
        %s792 = smul.addr %s791, 8
        %s793 = scalar_lea.vmem [#allocation2], %s792
        // Predicated region
        $region57: #{tpu_custom_call.1} parent=55 // pred_check
          %p794 = pneg %p235
        $region58: #{tpu_custom_call.1} parent=55 // pred_check_branch
          %796 = sbr.rel (%p794) target = $region60
        $region59: #{tpu_custom_call.1} parent=55 // pred_region
          %s798 = ssub.s32 128, 128
          %799 = vsyncadd %s790, %s798
          %s800 = smul.addr %s23, 128
          %s801 = scalar_lea.hbm %s9, %s800
          %s803 = sshll.u32 %s793, 4
          %s804 = int_to_ptr.vmem [resolvable:$true] %s803
          %806 = dma.vmem_to_hbm [thread:$0]  %s804, 128, %s801, %s790
        $region60: #{tpu_custom_call.1} parent=55 // pred_fallthru
          _
      $region56: #{tpu_custom_call.1} parent=5 // pred_fallthru
        _
      %p807 = scmp.le.s32.totalorder 2, %s18
      // Predicated region
      $region61: #{tpu_custom_call.1} parent=5 // pred_check
        %p808 = pneg %p807
      $region62: #{tpu_custom_call.1} parent=5 // pred_check_branch
        %810 = sbr.rel (%p808) target = $region64
      $region63: #{tpu_custom_call.1} parent=5 // pred_region
        %s811 = ssub.s32 %s18, 2
        // Predicated region
        $region65: #{tpu_custom_call.1} parent=63 // pred_check
          %p812 = pneg %p241
        $region66: #{tpu_custom_call.1} parent=63 // pred_check_branch
          %814 = sbr.rel (%p812) target = $region68
        $region67: #{tpu_custom_call.1} parent=63 // pred_region
          %s815 = sand.u32 %s226, 1
          %s816 = scalar_lea.sflag [#allocation3], %s815
          %s817 = sand.u32 %s226, 1
          %s818 = smul.addr %s817, 8
          %s819 = scalar_lea.vmem [#allocation2], %s818
          %820 = dma.done %s816, 128
        $region68: #{tpu_custom_call.1} parent=63 // pred_fallthru
          _
      $region64: #{tpu_custom_call.1} parent=5 // pred_fallthru
        _
    $region6: #{tpu_custom_call.1} parent=1 // loop_footer
      %s22 = sadd.s32 1, %s18
    $region7: #{tpu_custom_call.1} parent=1 // loop_footer_branch
      %17 = sbr.rel target = $region3
    $region8: #{tpu_custom_call.1} parent=1 // loop_exit
      _
    %821 = vsyncpa [#allocation3], 1
    %s822 = scalar_lea.sflag [#allocation3], 1
    %823 = vsyncpa %s822, 1

</llo_original>
